<compile_context>
chip_gen: v7x
topology: tpu7x:2x2x1
jax: 0.10.0
libtpu: 0.0.40
codegen_flags: <defaults>
</compile_context>

<pallas_src>
import functools

import jax
import jax.numpy as jnp
from jax.experimental import pallas as pl
from jax.experimental.pallas import tpu as pltpu


def _round_up(x, m):
    return ((x + m - 1) // m) * m


def mf_kernel(uid_ref, iid_ref, tbl_ref, o_ref, *, num_users, d_pad):
    # uid_ref / iid_ref : (1, TB)        int32 id tiles
    # tbl_ref           : (2*d_pad, Kp)  f32 block-diagonal transposed tables (VMEM-resident)
    # o_ref             : (1, TB)        f32 lane-dense output tile
    uids = uid_ref[...]                       # (1, TB)
    iids = iid_ref[...]                       # (1, TB)
    k_pad = tbl_ref.shape[1]
    tb = uids.shape[1]

    # One combined one-hot selection matrix (Kp, TB):
    #   rows [0, NU)      -> match the user id
    #   rows [NU, NU+NI)  -> match the item id (offset by NU)
    #   rows >= NU+NI     -> never match (K padding)
    row = jax.lax.broadcasted_iota(jnp.int32, (k_pad, tb), 0)
    target = jnp.where(row < num_users, uids, iids + num_users)   # broadcast (1,TB)
    onehot = (row == target).astype(jnp.float32)                  # (Kp, TB)

    # Single lane-dense MXU matmul gathers both embedding slabs at once.
    slab = jnp.dot(tbl_ref[...], onehot,
                   preferred_element_type=jnp.float32)            # (2*d_pad, TB)
    u_slab = slab[:d_pad, :]                                      # (d_pad, TB)
    i_slab = slab[d_pad:, :]                                      # (d_pad, TB)

    # Row-wise dot = elementwise product + sublane reduction -> lane-dense (1, TB).
    o_ref[...] = jnp.sum(u_slab * i_slab, axis=0, keepdims=True)


def prepare_mf_tables(user_table, item_table, *, lane_multiple=256):
    """Build the block-diagonal pre-transposed table ONCE (hoisted out of forward)."""
    num_users, d = user_table.shape
    num_items, d2 = item_table.shape
    assert d == d2
    d_pad = _round_up(d, 8)                           # sublane-aligned slab slices
    k_pad = _round_up(num_users + num_items, lane_multiple)
    tbl = jnp.zeros((2 * d_pad, k_pad), jnp.float32)
    tbl = tbl.at[:d, :num_users].set(user_table.astype(jnp.float32).T)
    tbl = tbl.at[d_pad:d_pad + d, num_users:num_users + num_items].set(
        item_table.astype(jnp.float32).T)
    return tbl, num_users, num_items, d_pad


def matrix_factorization_forward(user_ids, item_ids, prepared, *, tb_max=1024):
    """Pallas equivalent of MatrixFactorizationModel.forward -> (B,) float32."""
    tbl, num_users, num_items, d_pad = prepared
    k_pad = tbl.shape[1]
    B = user_ids.shape[0]

    # Batch tile: big enough to amortize per-grid-step overhead, small enough to
    # keep several tiles for the parallel (megacore) batch axis.
    tb = max(128, min(tb_max, _round_up(pl.cdiv(B, 8), 128)))

    # Rough VMEM-budget guard for the resident-table design.
    def _footprint(t):
        return (tbl.size * 4            # resident table (single copy, untiled VMEM)
                + k_pad * t * 4         # combined one-hot
                + 2 * d_pad * t * 4     # gathered slab
                + 6 * t * 4)            # id / output tiles (double-buffered)
    while _footprint(tb) > 24 * 1024 * 1024 and tb > 128:
        tb //= 2
    # TODO(synk): if the embedding tables themselves outgrow VMEM (v7x: 64 MiB/TC),
    # switch to a scalar-prefetch / per-row DMA gather instead of the resident
    # one-hot matmul.

    num_tiles = pl.cdiv(B, tb)
    b_pad = num_tiles * tb

    # Clamp ids (out-of-range would silently produce 0.0 via an all-zero one-hot),
    # pad the batch with jnp.pad (no scatter), and present as (1, B_pad) rows.
    uid = jnp.clip(user_ids.astype(jnp.int32), 0, num_users - 1)
    iid = jnp.clip(item_ids.astype(jnp.int32), 0, num_items - 1)
    uid = jnp.pad(uid, (0, b_pad - B)).reshape(1, b_pad)
    iid = jnp.pad(iid, (0, b_pad - B)).reshape(1, b_pad)

    kernel = functools.partial(mf_kernel, num_users=num_users, d_pad=d_pad)

    out = pl.pallas_call(
        kernel,
        out_shape=jax.ShapeDtypeStruct((1, b_pad), jnp.float32),
        grid=(num_tiles,),
        in_specs=[
            pl.BlockSpec((1, tb), lambda t: (0, t)),              # user id tile
            pl.BlockSpec((1, tb), lambda t: (0, t)),              # item id tile
            pl.BlockSpec(memory_space=pltpu.MemorySpace.VMEM),    # resident table (single copy)
        ],
        out_specs=pl.BlockSpec((1, tb), lambda t: (0, t)),
        compiler_params=pltpu.CompilerParams(
            dimension_semantics=("parallel",)),                   # shard tiles on v7x
    )(uid, iid, tbl)

    return out[0, :B]


def _reference(user_ids, item_ids, user_table, item_table):
    return jnp.sum(jnp.take(user_table, user_ids, axis=0)
                   * jnp.take(item_table, item_ids, axis=0), axis=1)


if __name__ == "__main__":
    # Module hyperparameters (small, consistent with the nn.Embedding shapes).
    num_users, num_items, embedding_dim = 64, 96, 32

    key = jax.random.PRNGKey(0)
    k_u, k_i, k_a, k_b, k_c, k_d, k_e, k_f = jax.random.split(key, 8)

    # nn.Embedding default init is N(0, 1).
    user_table = jax.random.normal(k_u, (num_users, embedding_dim), jnp.float32)
    item_table = jax.random.normal(k_i, (num_items, embedding_dim), jnp.float32)

    # Prepared (transposed / block-diagonal) table built once, outside forward.
    prepared = prepare_mf_tables(user_table, item_table)

    # Tolerance note: the in-kernel gather goes through the MXU; f32 matmul may
    # use multi-pass bf16 on some generations, so compare at 1e-2 (gather/dot
    # structural errors would be O(1), far above this).
    TOL = dict(atol=1e-2, rtol=1e-2)

    # Case 1: small batch (single tile, padded lanes).
    batch = 8
    uids = jax.random.randint(k_a, (batch,), 0, num_users, jnp.int32)
    iids = jax.random.randint(k_b, (batch,), 0, num_items, jnp.int32)
    out = jax.block_until_ready(matrix_factorization_forward(uids, iids, prepared))
    ref = _reference(uids, iids, user_table, item_table)
    assert out.shape == (batch,)
    assert jnp.allclose(out, ref, **TOL)

    # Case 2: multi-tile batch (grid > 1 + padding).
    batch2 = 260
    uids2 = jax.random.randint(k_c, (batch2,), 0, num_users, jnp.int32)
    iids2 = jax.random.randint(k_d, (batch2,), 0, num_items, jnp.int32)
    out2 = jax.block_until_ready(matrix_factorization_forward(uids2, iids2, prepared))
    ref2 = _reference(uids2, iids2, user_table, item_table)
    assert out2.shape == (batch2,)
    assert jnp.allclose(out2, ref2, **TOL)

    # Case 3: larger batch (exercises the adaptive tile size, TB=512, 8 tiles).
    batch3 = 4096
    uids3 = jax.random.randint(k_e, (batch3,), 0, num_users, jnp.int32)
    iids3 = jax.random.randint(k_f, (batch3,), 0, num_items, jnp.int32)
    out3 = jax.block_until_ready(matrix_factorization_forward(uids3, iids3, prepared))
    ref3 = _reference(uids3, iids3, user_table, item_table)
    assert out3.shape == (batch3,)
    assert jnp.allclose(out3, ref3, **TOL)

    print("KERNEL_OK")
</pallas_src>

<mosaic_0001>
module attributes {stable_mosaic.version = 11 : i64} {
  func.func @mf_kernel(%arg0: i32, %arg1: memref<1x128xi32, #tpu.memory_space<vmem>>, %arg2: memref<1x128xi32, #tpu.memory_space<vmem>>, %arg3: memref<64x256xf32, #tpu.memory_space<vmem>>, %arg4: memref<1x128xf32, #tpu.memory_space<vmem>>) attributes {dimension_semantics = [#tpu.dimension_semantics<parallel>], iteration_bounds = array<i64: 1>, scalar_prefetch = 0 : i64, scratch_operands = 0 : i64, tpu.core_type = #tpu.core_type<tc>, window_params = [{transform_indices = @transform_0, window_bounds = array<i64: 1, 128>}, {transform_indices = @transform_1, window_bounds = array<i64: 1, 128>}, {pipeline_mode = #tpu.pipeline_mode<synchronous>, transform_indices = @transform_2, window_bounds = array<i64: 64, 256>}, {transform_indices = @transform_3, window_bounds = array<i64: 1, 128>}]} {
    %c0 = arith.constant 0 : index
    %c0_0 = arith.constant 0 : index
    %0 = vector.load %arg1[%c0, %c0_0] : memref<1x128xi32, #tpu.memory_space<vmem>>, vector<1x128xi32>
    %c0_1 = arith.constant 0 : index
    %c0_2 = arith.constant 0 : index
    %1 = vector.load %arg2[%c0_1, %c0_2] : memref<1x128xi32, #tpu.memory_space<vmem>>, vector<1x128xi32>
    %2 = tpu.iota {dimensions = array<i32: 0>} : vector<256x128xi32>
    %c64_i32 = arith.constant 64 : i32
    %3 = vector.broadcast %c64_i32 : i32 to vector<256x128xi32>
    %4 = arith.cmpi slt, %2, %3 : vector<256x128xi32>
    %c64_i32_3 = arith.constant 64 : i32
    %5 = vector.broadcast %c64_i32_3 : i32 to vector<1x128xi32>
    %6 = arith.addi %1, %5 : vector<1x128xi32>
    %7 = vector.shape_cast %0 : vector<1x128xi32> to vector<1x128xi32>
    %8 = vector.broadcast %7 : vector<1x128xi32> to vector<256x128xi32>
    %9 = vector.shape_cast %6 : vector<1x128xi32> to vector<1x128xi32>
    %10 = vector.broadcast %9 : vector<1x128xi32> to vector<256x128xi32>
    %11 = arith.select %4, %8, %10 : vector<256x128xi1>, vector<256x128xi32>
    %12 = arith.cmpi eq, %2, %11 : vector<256x128xi32>
    %13 = arith.extui %12 : vector<256x128xi1> to vector<256x128xi32>
    %14 = arith.sitofp %13 : vector<256x128xi32> to vector<256x128xf32>
    %c0_4 = arith.constant 0 : index
    %c0_5 = arith.constant 0 : index
    %15 = vector.load %arg3[%c0_4, %c0_5] : memref<64x256xf32, #tpu.memory_space<vmem>>, vector<64x256xf32>
    %cst = arith.constant dense<0.000000e+00> : vector<64x128xf32>
    %16 = tpu.matmul %15, %14, %cst {dimension_numbers = #tpu.dot_dimension_numbers<[1], [0], [0], [1], [0, 0, 1, 1], [], []>} : vector<64x256xf32>, vector<256x128xf32>, vector<64x128xf32> -> vector<64x128xf32>
    %17 = vector.extract_strided_slice %16 {offsets = [0, 0], sizes = [32, 128], strides = [1, 1]} : vector<64x128xf32> to vector<32x128xf32>
    %18 = vector.extract_strided_slice %16 {offsets = [32, 0], sizes = [32, 128], strides = [1, 1]} : vector<64x128xf32> to vector<32x128xf32>
    %19 = arith.mulf %17, %18 : vector<32x128xf32>
    %cst_6 = arith.constant dense<0.000000e+00> : vector<128xf32>
    %20 = vector.multi_reduction <add>, %19, %cst_6 [0] : vector<32x128xf32> to vector<128xf32>
    %21 = vector.shape_cast %20 : vector<128xf32> to vector<1x128xf32>
    %c0_7 = arith.constant 0 : index
    %c0_8 = arith.constant 0 : index
    %22 = vector.load %arg4[%c0_7, %c0_8] : memref<1x128xf32, #tpu.memory_space<vmem>>, vector<1x128xf32>
    tpu.vector_store %arg4[%c0_7, %c0_8], %21 {strides = array<i32>} : memref<1x128xf32, #tpu.memory_space<vmem>>, vector<1x128xf32>,
    return
  }
  func.func @transform_0(%arg0: i32) -> (i32, i32) {
    %c0_i32 = arith.constant 0 : i32
    %c0_i32_0 = arith.constant 0 : i32
    return %c0_i32, %arg0 : i32, i32
  }
  func.func @transform_1(%arg0: i32) -> (i32, i32) {
    %c0_i32 = arith.constant 0 : i32
    %c0_i32_0 = arith.constant 0 : i32
    return %c0_i32, %arg0 : i32, i32
  }
  func.func @transform_2(%arg0: i32) -> (i32, i32) {
    %c0_i32 = arith.constant 0 : i32
    %c0_i32_0 = arith.constant 0 : i32
    %c0_i32_1 = arith.constant 0 : i32
    return %c0_i32, %c0_i32_0 : i32, i32
  }
  func.func @transform_3(%arg0: i32) -> (i32, i32) {
    %c0_i32 = arith.constant 0 : i32
    %c0_i32_0 = arith.constant 0 : i32
    return %c0_i32, %arg0 : i32, i32
  }
}

</mosaic_0001>

<llo_original>
// kernel: tpu_custom_call.1
$region0: #{tpu_custom_call.1}
  #allocation0 [shape = 'u32[]', space=smem, size = 0x4, offset = 0x4, fixed_abs, tag = 'smem constant byte address 0x4 - core index']
  #allocation1 [shape = 'u32[144,128]{1,0:T(1,128)}', space=vmem, size = 0x12000, scoped, tag = 'internal scratch']
  %s0 = inlined_call_operand.hbm [shape: s32[1,128], index: 0, kind: input, shape index: {}]
  %s1 = inlined_call_operand.vmem [shape: s32[1,128], index: 1, kind: input, shape index: {}]
  %s2 = inlined_call_operand.hbm [shape: f32[64,256], index: 2, kind: input, shape index: {}]
  %s3 = inlined_call_operand.hbm [shape: f32[1,128], index: 3, kind: output, shape index: {}]
  %s4 = sld [smem:[#allocation0]]
  $region30: #{tpu_custom_call.1} parent=0
    _
  %s6 = ssub.s32 1, %s4
  %s7 = scalar_select 0, %s6, %s4
  $region1: #{tpu_custom_call.1} parent=0
    #allocation2 [shape = 'u8[512]{0}', space=vmem, size = 0x400, scoped, tag = 'input window, operand 0, single buffered']
    #allocation3 [shape = 's32[1]{0}', space=sflag, size = 0x4, scoped, tag = 'scoped memory for tpu_custom_call.1']
    #allocation4 [shape = 's32[1]{0}', space=sflag, size = 0x4, scoped, tag = 'scoped memory for tpu_custom_call.1']
    #allocation5 [shape = 'u8[65536]{0}', space=vmem, size = 0x10000, scoped, tag = 'input window, operand 2, single buffered']
    #allocation6 [shape = 's32[1]{0}', space=sflag, size = 0x4, scoped, tag = 'scoped memory for tpu_custom_call.1']
    #allocation7 [shape = 'u8[512]{0}', space=vmem, size = 0x400, scoped, tag = 'output window, operand 0, single buffered']
    %8 = vsyncpa [#allocation3], 0
    %9 = vsyncpa [#allocation6], 0
    %10 = vsyncpa [#allocation4], 0
    // Predicated region
    $region2: #{tpu_custom_call.1} parent=1 // pred_check
      _
    $region3: #{tpu_custom_call.1} parent=1 // pred_check_branch
      %12 = sbr.rel (0) target = $region5
    $region4: #{tpu_custom_call.1} parent=1 // pred_region
      %s14 = ssub.s32 16, 16
      %15 = vsyncadd [#allocation3], %s14
      %s17 = sshll.u32 [#allocation2], 4
      %s18 = int_to_ptr.vmem [resolvable:$true] %s17
      %20 = dma.hbm_to_vmem [thread:$0]  %s0, 16, %s18, [#allocation3]
    $region5: #{tpu_custom_call.1} parent=1 // pred_fallthru
      _
    // Predicated region
    $region6: #{tpu_custom_call.1} parent=1 // pred_check
      _
    $region7: #{tpu_custom_call.1} parent=1 // pred_check_branch
      %22 = sbr.rel (0) target = $region9
    $region8: #{tpu_custom_call.1} parent=1 // pred_region
      _
    $region9: #{tpu_custom_call.1} parent=1 // pred_fallthru
      _
    // Predicated region
    $region10: #{tpu_custom_call.1} parent=1 // pred_check
      _
    $region11: #{tpu_custom_call.1} parent=1 // pred_check_branch
      %24 = sbr.rel (0) target = $region13
    $region12: #{tpu_custom_call.1} parent=1 // pred_region
      %s26 = ssub.s32 2048, 2048
      %27 = vsyncadd [#allocation6], %s26
      %s28 = sshll.u32 [#allocation5], 4
      %s29 = int_to_ptr.vmem [resolvable:$true] %s28
      %34 = dma.hbm_to_vmem [thread:$0]  %s2, 2048, %s29, [#allocation6], 256, 256, 16
    $region13: #{tpu_custom_call.1} parent=1 // pred_fallthru
      _
    // Predicated region
    $region14: #{tpu_custom_call.1} parent=1 // pred_check
      _
    $region15: #{tpu_custom_call.1} parent=1 // pred_check_branch
      %36 = sbr.rel (0) target = $region17
    $region16: #{tpu_custom_call.1} parent=1 // pred_region
      %37 = dma.done [#allocation3], 16
    $region17: #{tpu_custom_call.1} parent=1 // pred_fallthru
      _
    // Predicated region
    $region18: #{tpu_custom_call.1} parent=1 // pred_check
      _
    $region19: #{tpu_custom_call.1} parent=1 // pred_check_branch
      %39 = sbr.rel (0) target = $region21
    $region20: #{tpu_custom_call.1} parent=1 // pred_region
      %40 = dma.done [#allocation6], 2048
    $region21: #{tpu_custom_call.1} parent=1 // pred_fallthru
      _
    %v41 = vld [vmem:[#allocation2] sm:$0x1]
    %v42 = vld [vmem:[%s1] sm:$0x1]
    %v43 = vlaneseq
    %v44 = vshrl.u32 %v43, 7
    %v45 = vadd.s32 %v44, 8
    %v46 = vadd.s32 %v44, 16
    %v47 = vadd.s32 %v44, 24
    %v48 = vadd.s32 %v44, 32
    %v49 = vadd.s32 %v44, 40
    %v50 = vadd.s32 %v44, 48
    %v51 = vadd.s32 %v44, 56
    %v52 = vadd.s32 %v44, 64
    %v53 = vadd.s32 %v44, 72
    %v54 = vadd.s32 %v44, 80
    %v55 = vadd.s32 %v44, 88
    %v56 = vadd.s32 %v44, 96
    %v57 = vadd.s32 %v44, 104
    %v58 = vadd.s32 %v44, 112
    %v59 = vadd.s32 %v44, 120
    %v60 = vadd.s32 %v44, 128
    %v61 = vadd.s32 %v44, 136
    %v62 = vadd.s32 %v44, 144
    %v63 = vadd.s32 %v44, 152
    %v64 = vadd.s32 %v44, 160
    %v65 = vadd.s32 %v44, 168
    %v66 = vadd.s32 %v44, 176
    %v67 = vadd.s32 %v44, 184
    %v68 = vadd.s32 %v44, 192
    %v69 = vadd.s32 %v44, 200
    %v70 = vadd.s32 %v44, 208
    %v71 = vadd.s32 %v44, 216
    %v72 = vadd.s32 %v44, 224
    %v73 = vadd.s32 %v44, 232
    %v74 = vadd.s32 %v44, 240
    %v75 = vadd.s32 %v44, 248
    %vm76 = vcmp.lt.s32.totalorder %v44, 64
    %vm77 = vcmp.lt.s32.totalorder %v45, 64
    %vm78 = vcmp.lt.s32.totalorder %v46, 64
    %vm79 = vcmp.lt.s32.totalorder %v47, 64
    %vm80 = vcmp.lt.s32.totalorder %v48, 64
    %vm81 = vcmp.lt.s32.totalorder %v49, 64
    %vm82 = vcmp.lt.s32.totalorder %v50, 64
    %vm83 = vcmp.lt.s32.totalorder %v51, 64
    %vm84 = vcmp.lt.s32.totalorder %v52, 64
    %vm85 = vcmp.lt.s32.totalorder %v53, 64
    %vm86 = vcmp.lt.s32.totalorder %v54, 64
    %vm87 = vcmp.lt.s32.totalorder %v55, 64
    %vm88 = vcmp.lt.s32.totalorder %v56, 64
    %vm89 = vcmp.lt.s32.totalorder %v57, 64
    %vm90 = vcmp.lt.s32.totalorder %v58, 64
    %vm91 = vcmp.lt.s32.totalorder %v59, 64
    %vm92 = vcmp.lt.s32.totalorder %v60, 64
    %vm93 = vcmp.lt.s32.totalorder %v61, 64
    %vm94 = vcmp.lt.s32.totalorder %v62, 64
    %vm95 = vcmp.lt.s32.totalorder %v63, 64
    %vm96 = vcmp.lt.s32.totalorder %v64, 64
    %vm97 = vcmp.lt.s32.totalorder %v65, 64
    %vm98 = vcmp.lt.s32.totalorder %v66, 64
    %vm99 = vcmp.lt.s32.totalorder %v67, 64
    %vm100 = vcmp.lt.s32.totalorder %v68, 64
    %vm101 = vcmp.lt.s32.totalorder %v69, 64
    %vm102 = vcmp.lt.s32.totalorder %v70, 64
    %vm103 = vcmp.lt.s32.totalorder %v71, 64
    %vm104 = vcmp.lt.s32.totalorder %v72, 64
    %vm105 = vcmp.lt.s32.totalorder %v73, 64
    %vm106 = vcmp.lt.s32.totalorder %v74, 64
    %vm107 = vcmp.lt.s32.totalorder %v75, 64
    %v108 = vadd.s32 %v42, 64
    %v109 = vlaneseq
    %v110 = vshrl.u32 %v109, 7
    %v111 = vsub.s32 0, %v110
    %v112 = vrot.slane %v41, %v111
    %v113 = vlaneseq
    %v114 = vshrl.u32 %v113, 7
    %v115 = vsub.s32 0, %v114
    %v116 = vrot.slane %v108, %v115
    %v117 = vsel %vm76, %v112, %v116
    %v118 = vsel %vm77, %v112, %v116
    %v119 = vsel %vm78, %v112, %v116
    %v120 = vsel %vm79, %v112, %v116
    %v121 = vsel %vm80, %v112, %v116
    %v122 = vsel %vm81, %v112, %v116
    %v123 = vsel %vm82, %v112, %v116
    %v124 = vsel %vm83, %v112, %v116
    %v125 = vsel %vm84, %v112, %v116
    %v126 = vsel %vm85, %v112, %v116
    %v127 = vsel %vm86, %v112, %v116
    %v128 = vsel %vm87, %v112, %v116
    %v129 = vsel %vm88, %v112, %v116
    %v130 = vsel %vm89, %v112, %v116
    %v131 = vsel %vm90, %v112, %v116
    %v132 = vsel %vm91, %v112, %v116
    %v133 = vsel %vm92, %v112, %v116
    %v134 = vsel %vm93, %v112, %v116
    %v135 = vsel %vm94, %v112, %v116
    %v136 = vsel %vm95, %v112, %v116
    %v137 = vsel %vm96, %v112, %v116
    %v138 = vsel %vm97, %v112, %v116
    %v139 = vsel %vm98, %v112, %v116
    %v140 = vsel %vm99, %v112, %v116
    %v141 = vsel %vm100, %v112, %v116
    %v142 = vsel %vm101, %v112, %v116
    %v143 = vsel %vm102, %v112, %v116
    %v144 = vsel %vm103, %v112, %v116
    %v145 = vsel %vm104, %v112, %v116
    %v146 = vsel %vm105, %v112, %v116
    %v147 = vsel %vm106, %v112, %v116
    %v148 = vsel %vm107, %v112, %v116
    %vm149 = vcmp.eq.s32.totalorder %v44, %v117
    %vm150 = vcmp.eq.s32.totalorder %v45, %v118
    %vm151 = vcmp.eq.s32.totalorder %v46, %v119
    %vm152 = vcmp.eq.s32.totalorder %v47, %v120
    %vm153 = vcmp.eq.s32.totalorder %v48, %v121
    %vm154 = vcmp.eq.s32.totalorder %v49, %v122
    %vm155 = vcmp.eq.s32.totalorder %v50, %v123
    %vm156 = vcmp.eq.s32.totalorder %v51, %v124
    %vm157 = vcmp.eq.s32.totalorder %v52, %v125
    %vm158 = vcmp.eq.s32.totalorder %v53, %v126
    %vm159 = vcmp.eq.s32.totalorder %v54, %v127
    %vm160 = vcmp.eq.s32.totalorder %v55, %v128
    %vm161 = vcmp.eq.s32.totalorder %v56, %v129
    %vm162 = vcmp.eq.s32.totalorder %v57, %v130
    %vm163 = vcmp.eq.s32.totalorder %v58, %v131
    %vm164 = vcmp.eq.s32.totalorder %v59, %v132
    %vm165 = vcmp.eq.s32.totalorder %v60, %v133
    %vm166 = vcmp.eq.s32.totalorder %v61, %v134
    %vm167 = vcmp.eq.s32.totalorder %v62, %v135
    %vm168 = vcmp.eq.s32.totalorder %v63, %v136
    %vm169 = vcmp.eq.s32.totalorder %v64, %v137
    %vm170 = vcmp.eq.s32.totalorder %v65, %v138
    %vm171 = vcmp.eq.s32.totalorder %v66, %v139
    %vm172 = vcmp.eq.s32.totalorder %v67, %v140
    %vm173 = vcmp.eq.s32.totalorder %v68, %v141
    %vm174 = vcmp.eq.s32.totalorder %v69, %v142
    %vm175 = vcmp.eq.s32.totalorder %v70, %v143
    %vm176 = vcmp.eq.s32.totalorder %v71, %v144
    %vm177 = vcmp.eq.s32.totalorder %v72, %v145
    %vm178 = vcmp.eq.s32.totalorder %v73, %v146
    %vm179 = vcmp.eq.s32.totalorder %v74, %v147
    %vm180 = vcmp.eq.s32.totalorder %v75, %v148
    %v181 = vsel %vm149, 1, 0
    %v182 = vsel %vm150, 1, 0
    %v183 = vsel %vm151, 1, 0
    %v184 = vsel %vm152, 1, 0
    %v185 = vsel %vm153, 1, 0
    %v186 = vsel %vm154, 1, 0
    %v187 = vsel %vm155, 1, 0
    %v188 = vsel %vm156, 1, 0
    %v189 = vsel %vm157, 1, 0
    %v190 = vsel %vm158, 1, 0
    %v191 = vsel %vm159, 1, 0
    %v192 = vsel %vm160, 1, 0
    %v193 = vsel %vm161, 1, 0
    %v194 = vsel %vm162, 1, 0
    %v195 = vsel %vm163, 1, 0
    %v196 = vsel %vm164, 1, 0
    %v197 = vsel %vm165, 1, 0
    %v198 = vsel %vm166, 1, 0
    %v199 = vsel %vm167, 1, 0
    %v200 = vsel %vm168, 1, 0
    %v201 = vsel %vm169, 1, 0
    %v202 = vsel %vm170, 1, 0
    %v203 = vsel %vm171, 1, 0
    %v204 = vsel %vm172, 1, 0
    %v205 = vsel %vm173, 1, 0
    %v206 = vsel %vm174, 1, 0
    %v207 = vsel %vm175, 1, 0
    %v208 = vsel %vm176, 1, 0
    %v209 = vsel %vm177, 1, 0
    %v210 = vsel %vm178, 1, 0
    %v211 = vsel %vm179, 1, 0
    %v212 = vsel %vm180, 1, 0
    %v213 = vcvt.s32.f32 %v181
    %v214 = vcvt.s32.f32 %v182
    %v215 = vcvt.s32.f32 %v183
    %v216 = vcvt.s32.f32 %v184
    %v217 = vcvt.s32.f32 %v185
    %v218 = vcvt.s32.f32 %v186
    %v219 = vcvt.s32.f32 %v187
    %v220 = vcvt.s32.f32 %v188
    %v221 = vcvt.s32.f32 %v189
    %v222 = vcvt.s32.f32 %v190
    %v223 = vcvt.s32.f32 %v191
    %v224 = vcvt.s32.f32 %v192
    %v225 = vcvt.s32.f32 %v193
    %v226 = vcvt.s32.f32 %v194
    %v227 = vcvt.s32.f32 %v195
    %v228 = vcvt.s32.f32 %v196
    %v229 = vcvt.s32.f32 %v197
    %v230 = vcvt.s32.f32 %v198
    %v231 = vcvt.s32.f32 %v199
    %v232 = vcvt.s32.f32 %v200
    %v233 = vcvt.s32.f32 %v201
    %v234 = vcvt.s32.f32 %v202
    %v235 = vcvt.s32.f32 %v203
    %v236 = vcvt.s32.f32 %v204
    %v237 = vcvt.s32.f32 %v205
    %v238 = vcvt.s32.f32 %v206
    %v239 = vcvt.s32.f32 %v207
    %v240 = vcvt.s32.f32 %v208
    %v241 = vcvt.s32.f32 %v209
    %v242 = vcvt.s32.f32 %v210
    %v243 = vcvt.s32.f32 %v211
    %v244 = vcvt.s32.f32 %v212
    %v245 = vld [vmem:[#allocation5] sm:$0xff]
    %v246 = vld [vmem:[#allocation5 + $0x8] sm:$0xff]
    %v247 = vld [vmem:[#allocation5 + $0x10] sm:$0xff]
    %v248 = vld [vmem:[#allocation5 + $0x18] sm:$0xff]
    %v249 = vld [vmem:[#allocation5 + $0x20] sm:$0xff]
    %v250 = vld [vmem:[#allocation5 + $0x28] sm:$0xff]
    %v251 = vld [vmem:[#allocation5 + $0x30] sm:$0xff]
    %v252 = vld [vmem:[#allocation5 + $0x38] sm:$0xff]
    %v253 = vld [vmem:[#allocation5 + $0x40] sm:$0xff]
    %v254 = vld [vmem:[#allocation5 + $0x48] sm:$0xff]
    %v255 = vld [vmem:[#allocation5 + $0x50] sm:$0xff]
    %v256 = vld [vmem:[#allocation5 + $0x58] sm:$0xff]
    %v257 = vld [vmem:[#allocation5 + $0x60] sm:$0xff]
    %v258 = vld [vmem:[#allocation5 + $0x68] sm:$0xff]
    %v259 = vld [vmem:[#allocation5 + $0x70] sm:$0xff]
    %v260 = vld [vmem:[#allocation5 + $0x78] sm:$0xff]
    %261 = vmatprep.subr.mxu0 0.0
    %262 = vmatpush1.msra.mxu0 %v213
    %263 = vmatprep.subr.mxu0 0.0
    %264 = vmatpush1.msra.mxu0 %v214
    %265 = vmatprep.subr.mxu0 0.0
    %266 = vmatpush1.msra.mxu0 %v215
    %267 = vmatprep.subr.mxu0 0.0
    %268 = vmatpush1.msra.mxu0 %v216
    %269 = vmatprep.subr.mxu0 0.0
    %270 = vmatpush1.msra.mxu0 %v217
    %271 = vmatprep.subr.mxu0 0.0
    %272 = vmatpush1.msra.mxu0 %v218
    %273 = vmatprep.subr.mxu0 0.0
    %274 = vmatpush1.msra.mxu0 %v219
    %275 = vmatprep.subr.mxu0 0.0
    %276 = vmatpush1.msra.mxu0 %v220
    %277 = vmatprep.subr.mxu0 0.0
    %278 = vmatpush1.msra.mxu0 %v221
    %279 = vmatprep.subr.mxu0 0.0
    %280 = vmatpush1.msra.mxu0 %v222
    %281 = vmatprep.subr.mxu0 0.0
    %282 = vmatpush1.msra.mxu0 %v223
    %283 = vmatprep.subr.mxu0 0.0
    %284 = vmatpush1.msra.mxu0 %v224
    %285 = vmatprep.subr.mxu0 0.0
    %286 = vmatpush1.msra.mxu0 %v225
    %287 = vmatprep.subr.mxu0 0.0
    %288 = vmatpush1.msra.mxu0 %v226
    %289 = vmatprep.subr.mxu0 0.0
    %290 = vmatpush1.msra.mxu0 %v227
    %291 = vmatprep.subr.mxu0 0.0
    %292 = vmatpush1.msra.mxu0 %v228
    %293 = vmatprep.subr.mxu0 0.0
    %294 = vmatpush1.msra.mxu0 %v229
    %295 = vmatprep.subr.mxu0 0.0
    %296 = vmatpush1.msra.mxu0 %v230
    %297 = vmatprep.subr.mxu0 0.0
    %298 = vmatpush1.msra.mxu0 %v231
    %299 = vmatprep.subr.mxu0 0.0
    %300 = vmatpush1.msra.mxu0 %v232
    %301 = vmatprep.subr.mxu0 0.0
    %302 = vmatpush1.msra.mxu0 %v233
    %303 = vmatprep.subr.mxu0 0.0
    %304 = vmatpush1.msra.mxu0 %v234
    %305 = vmatprep.subr.mxu0 0.0
    %306 = vmatpush1.msra.mxu0 %v235
    %307 = vmatprep.subr.mxu0 0.0
    %308 = vmatpush1.msra.mxu0 %v236
    %309 = vmatprep.subr.mxu0 0.0
    %310 = vmatpush1.msra.mxu0 %v237
    %311 = vmatprep.subr.mxu0 0.0
    %312 = vmatpush1.msra.mxu0 %v238
    %313 = vmatprep.subr.mxu0 0.0
    %314 = vmatpush1.msra.mxu0 %v239
    %315 = vmatprep.subr.mxu0 0.0
    %316 = vmatpush1.msra.mxu0 %v240
    %317 = vmatprep.subr.mxu0 0.0
    %318 = vmatpush1.msra.mxu0 %v241
    %319 = vmatprep.subr.mxu0 0.0
    %320 = vmatpush1.msra.mxu0 %v242
    %321 = vmatprep.subr.mxu0 0.0
    %322 = vmatpush1.msra.mxu0 %v243
    %323 = vmatprep.subr.mxu0 0.0
    %324 = vmatpush1.msra.mxu0 %v244
    %325 = vmatprep.mubr.f32.mxu0 %v246
    %326 = vmatmul.mubr.f32.gmra.mrb[0].mxu0 %v245
    %v327 = vpop.f32.mrb[0].mxu0
    %v328 = vadd.f32 0.0, %v327
    %v329 = vpop.f32.mrb[0].mxu0
    %330 = vmatprep.mubr.f32.mxu0 %v248
    %331 = vmatmul.mubr.f32.gmra.mrb[0].mxu0 %v247
    %v332 = vpop.f32.mrb[0].mxu0
    %v333 = vadd.f32 0.0, %v332
    %v334 = vpop.f32.mrb[0].mxu0
    %335 = vmatprep.mubr.f32.mxu0 %v250
    %336 = vmatmul.mubr.f32.gmra.mrb[0].mxu0 %v249
    %v337 = vpop.f32.mrb[0].mxu0
    %v338 = vadd.f32 0.0, %v337
    %v339 = vpop.f32.mrb[0].mxu0
    %340 = vmatprep.mubr.f32.mxu0 %v252
    %341 = vmatmul.mubr.f32.gmra.mrb[0].mxu0 %v251
    %v342 = vpop.f32.mrb[0].mxu0
    %v343 = vadd.f32 0.0, %v342
    %v344 = vpop.f32.mrb[0].mxu0
    %345 = vmatprep.mubr.f32.mxu0 %v254
    %346 = vmatmul.mubr.f32.gmra.mrb[0].mxu0 %v253
    %v347 = vpop.f32.mrb[0].mxu0
    %v348 = vadd.f32 0.0, %v347
    %v349 = vpop.f32.mrb[0].mxu0
    %350 = vmatprep.mubr.f32.mxu0 %v256
    %351 = vmatmul.mubr.f32.gmra.mrb[0].mxu0 %v255
    %v352 = vpop.f32.mrb[0].mxu0
    %v353 = vadd.f32 0.0, %v352
    %v354 = vpop.f32.mrb[0].mxu0
    %355 = vmatprep.mubr.f32.mxu0 %v258
    %356 = vmatmul.mubr.f32.gmra.mrb[0].mxu0 %v257
    %v357 = vpop.f32.mrb[0].mxu0
    %v358 = vadd.f32 0.0, %v357
    %v359 = vpop.f32.mrb[0].mxu0
    %360 = vmatprep.mubr.f32.mxu0 %v260
    %361 = vmatmul.mubr.f32.gmra.mrb[0].mxu0 %v259
    %v362 = vpop.f32.mrb[0].mxu0
    %v363 = vadd.f32 0.0, %v362
    %v364 = vpop.f32.mrb[0].mxu0
    %365 = vdwg.mxu0
    %v366 = vmul.f32 %v328, %v348
    %v367 = vmul.f32 %v333, %v353
    %v368 = vmul.f32 %v338, %v358
    %v369 = vmul.f32 %v343, %v363
    %v370 = vadd.f32 %v366, %v367
    %v371 = vadd.f32 %v370, %v368
    %v372 = vadd.f32 %v371, %v369
    %v373 = vrot.slane %v372, 4
    %v374 = vadd.f32 %v372, %v373
    %v375 = vrot.slane %v374, 2
    %v376 = vadd.f32 %v374, %v375
    %v377 = vrot.slane %v376, 1
    %v378 = vadd.f32 %v376, %v377
    %379 = vst [vmem:[#allocation7] sm:$0x1] %v378
    // Predicated region
    $region22: #{tpu_custom_call.1} parent=1 // pred_check
      _
    $region23: #{tpu_custom_call.1} parent=1 // pred_check_branch
      %381 = sbr.rel (0) target = $region25
    $region24: #{tpu_custom_call.1} parent=1 // pred_region
      %s383 = ssub.s32 16, 16
      %384 = vsyncadd [#allocation4], %s383
      %s386 = sshll.u32 [#allocation7], 4
      %s387 = int_to_ptr.vmem [resolvable:$true] %s386
      %389 = dma.vmem_to_hbm [thread:$0]  %s387, 16, %s3, [#allocation4]
    $region25: #{tpu_custom_call.1} parent=1 // pred_fallthru
      _
    // Predicated region
    $region26: #{tpu_custom_call.1} parent=1 // pred_check
      _
    $region27: #{tpu_custom_call.1} parent=1 // pred_check_branch
      %391 = sbr.rel (0) target = $region29
    $region28: #{tpu_custom_call.1} parent=1 // pred_region
      %392 = dma.done [#allocation4], 16
    $region29: #{tpu_custom_call.1} parent=1 // pred_fallthru
      _
    %393 = vsyncpa [#allocation3], 1
    %394 = vsyncpa [#allocation6], 1
    %395 = vsyncpa [#allocation4], 1

</llo_original>
